<compile_context>
chip_gen: v7x
topology: tpu7x:2x2x1
jax: 0.10.0
libtpu: 0.0.40
codegen_flags: <defaults>
</compile_context>

<pallas_src>
import jax
import jax.numpy as jnp
from jax.experimental import pallas as pl
from jax.experimental.pallas import tpu as pltpu


def _make_mse_partial_kernel(rows, tile_r, need_mask):
    """Kernel: per-block partial sum of squared differences (f32)."""

    def kernel(x_ref, t_ref, partial_ref):
        d = x_ref[...].astype(jnp.float32) - t_ref[...].astype(jnp.float32)
        if need_mask:
            # Last block may extend past `rows`; Pallas does not zero the
            # out-of-bounds part of the VMEM tile, so mask every OOB row.
            row0 = pl.program_id(0) * tile_r
            rid = jax.lax.broadcasted_iota(jnp.int32, d.shape, 0) + row0
            d = jnp.where(rid < rows, d, 0.0)
        s = jnp.sum(d * d)
        # Lane-dense per-step output block; wrapper reads [i, 0, 0].
        partial_ref[...] = jnp.broadcast_to(s, partial_ref.shape)

    return kernel


def _round_up(a, b):
    return (a + b - 1) // b * b


def _choose_cols(x):
    """Lane (minor) dimension for the 2-D view; reshape is metadata-only."""
    n_total = x.size
    for c in (1024, 512, 256, 128):
        if n_total % c == 0:
            return c
    # Fall back to the original minor dim (collapse leading dims for free).
    # TODO(synk): a huge, 128-indivisible minor dim (e.g. a prime-length 1-D
    # input) would need column blocking + lane masking; not needed for the
    # NCHW feature maps ContentLoss sees.
    return x.shape[-1] if x.ndim > 0 else 1


def content_loss_forward(x, target, *, max_tile_bytes=2 * 1024 * 1024):
    """Pallas equivalent of ContentLoss.forward.

    Returns (input, mse_loss): `input` is passed through untouched (exactly
    what forward() returns) and `mse_loss = mean((input - target)**2)` over
    all elements (F.mse_loss default 'mean'), which the module stores as
    `self.loss`.
    """
    assert x.shape == target.shape, (x.shape, target.shape)
    assert x.dtype == target.dtype, (x.dtype, target.dtype)

    n_total = x.size
    itemsize = jnp.dtype(x.dtype).itemsize
    # Sublane multiple for packed sub-32-bit dtypes (8 f32, 16 bf16, 32 int8).
    sublane = 8 * max(1, 4 // itemsize)

    # Free (metadata-only) 2-D view: no padding, no extra HBM traffic.
    cols = _choose_cols(x)
    rows = n_total // cols
    x2 = x.reshape(rows, cols)
    t2 = target.reshape(rows, cols)

    # Rows per tile, budgeted with an f32-equivalent footprint so the
    # in-kernel f32 temporaries stay bounded for narrow input dtypes.
    rows_budget = max(sublane, (max_tile_bytes // (cols * 4)) // sublane * sublane)
    if rows <= rows_budget:
        tile_r = rows          # full extent: always a legal block dim
    else:
        tile_r = rows_budget   # multiple of the sublane packing
    grid_r = pl.cdiv(rows, tile_r)
    need_mask = (rows % tile_r) != 0

    kernel = _make_mse_partial_kernel(rows, tile_r, need_mask)

    partials = pl.pallas_call(
        kernel,
        out_shape=jax.ShapeDtypeStruct((grid_r, 8, 128), jnp.float32),
        grid_spec=pltpu.PrefetchScalarGridSpec(
            num_scalar_prefetch=0,
            grid=(grid_r,),
            in_specs=[
                pl.BlockSpec((tile_r, cols), lambda i: (i, 0)),
                pl.BlockSpec((tile_r, cols), lambda i: (i, 0)),
            ],
            # Each grid step owns its own output block -> the grid axis can be
            # "parallel" (v7x megacore) without cores sharing a resident buffer.
            out_specs=pl.BlockSpec((1, 8, 128), lambda i: (i, 0, 0)),
        ),
        compiler_params=pltpu.CompilerParams(
            dimension_semantics=("parallel",),
            vmem_limit_bytes=32 * 1024 * 1024,
        ),
        cost_estimate=pl.CostEstimate(
            flops=3 * n_total,
            transcendentals=0,
            bytes_accessed=2 * n_total * itemsize + grid_r * 8 * 128 * 4,
        ),
    )(x2, t2)

    loss = jnp.sum(partials[:, 0, 0]) / jnp.float32(n_total)
    # Pass-through: forward() returns its input unchanged (no kernel traffic).
    return x, loss


if __name__ == "__main__":
    key = jax.random.PRNGKey(0)
    k1, k2, k3, k4, k5, k6, k7, k8 = jax.random.split(key, 8)

    # 1) Small NCHW feature map consistent with the module (aligned path).
    x = jax.random.normal(k1, (2, 4, 16, 16), dtype=jnp.float32)
    t = jax.random.normal(k2, (2, 4, 16, 16), dtype=jnp.float32)
    out, loss = content_loss_forward(x, t)
    loss = jax.block_until_ready(loss)
    out = jax.block_until_ready(out)
    ref = jnp.mean((x - t) ** 2)
    assert jnp.allclose(loss, ref, rtol=1e-5, atol=1e-6), (loss, ref)
    assert jnp.array_equal(out, x), "pass-through output mismatch"

    # 2) Non-128-divisible size: falls back to collapsing leading dims; no pad.
    xb = jax.random.normal(k3, (1, 3, 19, 27), dtype=jnp.float32)
    tb = jax.random.normal(k4, (1, 3, 19, 27), dtype=jnp.float32)
    _, loss_b = content_loss_forward(xb, tb)
    loss_b = jax.block_until_ready(loss_b)
    ref_b = jnp.mean((xb - tb) ** 2)
    assert jnp.allclose(loss_b, ref_b, rtol=1e-5, atol=1e-6), (loss_b, ref_b)

    # 3) Multi-step grid with a ragged final block -> exercises in-kernel
    #    masking of the non-zeroed OOB rows (small tile budget forces tiling).
    xc = jax.random.normal(k5, (1, 250, 32, 32), dtype=jnp.float32)
    tc = jax.random.normal(k6, (1, 250, 32, 32), dtype=jnp.float32)
    _, loss_c = content_loss_forward(xc, tc, max_tile_bytes=64 * 1024)
    loss_c = jax.block_until_ready(loss_c)
    ref_c = jnp.mean((xc - tc) ** 2)
    assert jnp.allclose(loss_c, ref_c, rtol=1e-4, atol=1e-6), (loss_c, ref_c)

    # 4) bf16 inputs: f32 accumulation, sublane-packed budgeting.
    xd = jax.random.normal(k7, (2, 8, 32, 64), dtype=jnp.bfloat16)
    td = jax.random.normal(k8, (2, 8, 32, 64), dtype=jnp.bfloat16)
    _, loss_d = content_loss_forward(xd, td)
    loss_d = jax.block_until_ready(loss_d)
    ref_d = jnp.mean(
        (xd.astype(jnp.float32) - td.astype(jnp.float32)) ** 2)
    assert jnp.allclose(loss_d, ref_d, rtol=1e-4, atol=1e-6), (loss_d, ref_d)

    print("KERNEL_OK")
</pallas_src>

<mosaic_0001>
module attributes {stable_mosaic.version = 11 : i64} {
  func.func @kernel(%arg0: i32, %arg1: memref<2x1024xf32, #tpu.memory_space<vmem>>, %arg2: memref<2x1024xf32, #tpu.memory_space<vmem>>, %arg3: memref<1x8x128xf32, #tpu.memory_space<vmem>>) attributes {dimension_semantics = [#tpu.dimension_semantics<parallel>], iteration_bounds = array<i64: 1>, scalar_prefetch = 0 : i64, scratch_operands = 0 : i64, tpu.core_type = #tpu.core_type<tc>, window_params = [{transform_indices = @transform_0, window_bounds = array<i64: 2, 1024>}, {transform_indices = @transform_1, window_bounds = array<i64: 2, 1024>}, {transform_indices = @transform_2, window_bounds = array<i64: 1, 8, 128>}]} {
    %c0 = arith.constant 0 : index
    %c0_0 = arith.constant 0 : index
    %0 = vector.load %arg1[%c0, %c0_0] : memref<2x1024xf32, #tpu.memory_space<vmem>>, vector<2x1024xf32>
    %c0_1 = arith.constant 0 : index
    %c0_2 = arith.constant 0 : index
    %1 = vector.load %arg2[%c0_1, %c0_2] : memref<2x1024xf32, #tpu.memory_space<vmem>>, vector<2x1024xf32>
    %2 = arith.subf %0, %1 : vector<2x1024xf32>
    %3 = arith.mulf %2, %2 : vector<2x1024xf32>
    %4 = vector.shape_cast %3 : vector<2x1024xf32> to vector<1x2x1024xf32>
    %cst = arith.constant dense<0.000000e+00> : vector<1xf32>
    %5 = vector.multi_reduction <add>, %4, %cst [1, 2] : vector<1x2x1024xf32> to vector<1xf32>
    %6 = vector.shape_cast %5 : vector<1xf32> to vector<1x1x1xf32>
    %7 = vector.extract %6[0, 0, 0] : f32 from vector<1x1x1xf32>
    %8 = vector.broadcast %7 : f32 to vector<1x8x128xf32>
    %c0_3 = arith.constant 0 : index
    %c0_4 = arith.constant 0 : index
    %c0_5 = arith.constant 0 : index
    %9 = vector.load %arg3[%c0_3, %c0_4, %c0_5] : memref<1x8x128xf32, #tpu.memory_space<vmem>>, vector<1x8x128xf32>
    tpu.vector_store %arg3[%c0_3, %c0_4, %c0_5], %8 {strides = array<i32>} : memref<1x8x128xf32, #tpu.memory_space<vmem>>, vector<1x8x128xf32>,
    return
  }
  func.func @transform_0(%arg0: i32) -> (i32, i32) {
    %c0_i32 = arith.constant 0 : i32
    %c0_i32_0 = arith.constant 0 : i32
    return %arg0, %c0_i32 : i32, i32
  }
  func.func @transform_1(%arg0: i32) -> (i32, i32) {
    %c0_i32 = arith.constant 0 : i32
    %c0_i32_0 = arith.constant 0 : i32
    return %arg0, %c0_i32 : i32, i32
  }
  func.func @transform_2(%arg0: i32) -> (i32, i32, i32) {
    %c0_i32 = arith.constant 0 : i32
    %c0_i32_0 = arith.constant 0 : i32
    %c0_i32_1 = arith.constant 0 : i32
    return %arg0, %c0_i32, %c0_i32_0 : i32, i32, i32
  }
}

</mosaic_0001>

<llo_original>
// kernel: tpu_custom_call.1
$region0: #{tpu_custom_call.1}
  #allocation0 [shape = 'u32[]', space=smem, size = 0x4, offset = 0x4, fixed_abs, tag = 'smem constant byte address 0x4 - core index']
  #allocation1 [shape = 'u32[144,128]{1,0:T(1,128)}', space=vmem, size = 0x12000, scoped, tag = 'internal scratch']
  %s0 = inlined_call_operand.hbm [shape: f32[2,1024], index: 0, kind: input, shape index: {}]
  %s1 = inlined_call_operand.hbm [shape: f32[2,1024], index: 1, kind: input, shape index: {}]
  %s2 = inlined_call_operand.hbm [shape: f32[1,8,128], index: 2, kind: output, shape index: {}]
  %s3 = sld [smem:[#allocation0]]
  $region26: #{tpu_custom_call.1} parent=0
    _
  %s5 = ssub.s32 1, %s3
  %s6 = scalar_select 0, %s5, %s3
  $region1: #{tpu_custom_call.1} parent=0
    #allocation2 [shape = 'u8[8192]{0}', space=vmem, size = 0x2000, scoped, tag = 'input window, operand 0, single buffered']
    #allocation3 [shape = 's32[1]{0}', space=sflag, size = 0x4, scoped, tag = 'scoped memory for tpu_custom_call.1']
    #allocation4 [shape = 's32[1]{0}', space=sflag, size = 0x4, scoped, tag = 'scoped memory for tpu_custom_call.1']
    #allocation5 [shape = 'u8[8192]{0}', space=vmem, size = 0x2000, scoped, tag = 'input window, operand 1, single buffered']
    #allocation6 [shape = 's32[1]{0}', space=sflag, size = 0x4, scoped, tag = 'scoped memory for tpu_custom_call.1']
    #allocation7 [shape = 'u8[4096]{0}', space=vmem, size = 0x1000, scoped, tag = 'output window, operand 0, single buffered']
    %7 = vsyncpa [#allocation3], 0
    %8 = vsyncpa [#allocation6], 0
    %9 = vsyncpa [#allocation4], 0
    // Predicated region
    $region2: #{tpu_custom_call.1} parent=1 // pred_check
      _
    $region3: #{tpu_custom_call.1} parent=1 // pred_check_branch
      %11 = sbr.rel (0) target = $region5
    $region4: #{tpu_custom_call.1} parent=1 // pred_region
      %s13 = ssub.s32 256, 256
      %14 = vsyncadd [#allocation3], %s13
      %s16 = sshll.u32 [#allocation2], 4
      %s17 = int_to_ptr.vmem [resolvable:$true] %s16
      %19 = dma.hbm_to_vmem [thread:$0]  %s0, 256, %s17, [#allocation3]
    $region5: #{tpu_custom_call.1} parent=1 // pred_fallthru
      _
    // Predicated region
    $region6: #{tpu_custom_call.1} parent=1 // pred_check
      _
    $region7: #{tpu_custom_call.1} parent=1 // pred_check_branch
      %21 = sbr.rel (0) target = $region9
    $region8: #{tpu_custom_call.1} parent=1 // pred_region
      %s23 = ssub.s32 256, 256
      %24 = vsyncadd [#allocation6], %s23
      %s26 = sshll.u32 [#allocation5], 4
      %s27 = int_to_ptr.vmem [resolvable:$true] %s26
      %29 = dma.hbm_to_vmem [thread:$0]  %s1, 256, %s27, [#allocation6]
    $region9: #{tpu_custom_call.1} parent=1 // pred_fallthru
      _
    // Predicated region
    $region10: #{tpu_custom_call.1} parent=1 // pred_check
      _
    $region11: #{tpu_custom_call.1} parent=1 // pred_check_branch
      %31 = sbr.rel (0) target = $region13
    $region12: #{tpu_custom_call.1} parent=1 // pred_region
      %32 = dma.done [#allocation3], 256
    $region13: #{tpu_custom_call.1} parent=1 // pred_fallthru
      _
    // Predicated region
    $region14: #{tpu_custom_call.1} parent=1 // pred_check
      _
    $region15: #{tpu_custom_call.1} parent=1 // pred_check_branch
      %34 = sbr.rel (0) target = $region17
    $region16: #{tpu_custom_call.1} parent=1 // pred_region
      %35 = dma.done [#allocation6], 256
    $region17: #{tpu_custom_call.1} parent=1 // pred_fallthru
      _
    %v36 = vld [vmem:[#allocation2] sm:$0xff]
    %v37 = vld [vmem:[#allocation2 + $0x8] sm:$0xff]
    %v38 = vld [vmem:[#allocation5] sm:$0xff]
    %v39 = vld [vmem:[#allocation5 + $0x8] sm:$0xff]
    %v40 = vsub.f32 %v36, %v38
    %v41 = vsub.f32 %v37, %v39
    %v42 = vmul.f32 %v40, %v40
    %v43 = vmul.f32 %v41, %v41
    %v46 = vcombine.high %v42, %v42
    %v48 = vunpack.c.l.s4 1983009808
    %v49 = vunpack.c.0.s8 %v48
    %v50 = vlaneseq
    %v51 = vshrl.u32 %v50, 7
    %v52 = vsub.s32 %v49, %v51
    %v53 = vrot.slane %v42, %v52
    %v55 = vunpack.c.l.s4 1983009808
    %v56 = vunpack.c.0.s8 %v55
    %v57 = vlaneseq
    %v58 = vshrl.u32 %v57, 7
    %v59 = vsub.s32 %v56, %v58
    %v60 = vrot.slane %v46, %v59
    %v61 = vcombine.high %v53, %v53
    %v62 = vcombine.high %v60, %v60
    %v63 = vcombine.high %v43, %v43
    %v65 = vunpack.c.l.s4 1983009808
    %v66 = vunpack.c.0.s8 %v65
    %v67 = vlaneseq
    %v68 = vshrl.u32 %v67, 7
    %v69 = vsub.s32 %v66, %v68
    %v70 = vrot.slane %v43, %v69
    %v72 = vunpack.c.l.s4 1983009808
    %v73 = vunpack.c.0.s8 %v72
    %v74 = vlaneseq
    %v75 = vshrl.u32 %v74, 7
    %v76 = vsub.s32 %v73, %v75
    %v77 = vrot.slane %v63, %v76
    %v78 = vcombine.high %v70, %v70
    %v79 = vcombine.high %v77, %v77
    %vm88 = vcmask 1041408
    %v89 = vsel %vm88, %v53, 0.0
    %v90 = vsel %vm88, %v61, 0.0
    %v91 = vadd.f32 %v89, %v90
    %v92 = vsel %vm88, %v60, 0.0
    %v93 = vadd.f32 %v91, %v92
    %v94 = vsel %vm88, %v62, 0.0
    %v95 = vadd.f32 %v93, %v94
    %v96 = vsel %vm88, %v70, 0.0
    %v97 = vadd.f32 %v95, %v96
    %v98 = vsel %vm88, %v78, 0.0
    %v99 = vadd.f32 %v97, %v98
    %v100 = vsel %vm88, %v77, 0.0
    %v101 = vadd.f32 %v99, %v100
    %v102 = vsel %vm88, %v79, 0.0
    %v103 = vadd.f32 %v101, %v102
    %104 = vadd.xlane.f32.xlu0 %v103
    %v105 = vpop.xlane.xlu0 %104
    %v106 = vrot.slane %v105, 4
    %v107 = vadd.f32 %v105, %v106
    %v108 = vrot.slane %v107, 2
    %v109 = vadd.f32 %v107, %v108
    %v110 = vrot.slane %v109, 1
    %v111 = vadd.f32 %v109, %v110
    %s112 = vtos %v111
    %v113 = vstv %s112
    %114 = vst [vmem:[#allocation7] sm:$0xff] %v113
    // Predicated region
    $region18: #{tpu_custom_call.1} parent=1 // pred_check
      _
    $region19: #{tpu_custom_call.1} parent=1 // pred_check_branch
      %116 = sbr.rel (0) target = $region21
    $region20: #{tpu_custom_call.1} parent=1 // pred_region
      %s118 = ssub.s32 128, 128
      %119 = vsyncadd [#allocation4], %s118
      %s121 = sshll.u32 [#allocation7], 4
      %s122 = int_to_ptr.vmem [resolvable:$true] %s121
      %124 = dma.vmem_to_hbm [thread:$0]  %s122, 128, %s2, [#allocation4]
    $region21: #{tpu_custom_call.1} parent=1 // pred_fallthru
      _
    // Predicated region
    $region22: #{tpu_custom_call.1} parent=1 // pred_check
      _
    $region23: #{tpu_custom_call.1} parent=1 // pred_check_branch
      %126 = sbr.rel (0) target = $region25
    $region24: #{tpu_custom_call.1} parent=1 // pred_region
      %127 = dma.done [#allocation4], 128
    $region25: #{tpu_custom_call.1} parent=1 // pred_fallthru
      _
    %128 = vsyncpa [#allocation3], 1
    %129 = vsyncpa [#allocation6], 1
    %130 = vsyncpa [#allocation4], 1

</llo_original>
